<compile_context>
chip_gen: v7x
topology: tpu7x:2x2x1
jax: 0.10.0
libtpu: 0.0.40
codegen_flags: <defaults>
</compile_context>

<pallas_src>
import math

import jax
import jax.numpy as jnp
from jax.experimental import pallas as pl
from jax.experimental.pallas import tpu as pltpu


def _gelu_tanh(x):
    # GELU with tanh approximation (matches nn.GELU(approximate='tanh')).
    c = math.sqrt(2.0 / math.pi)
    return 0.5 * x * (1.0 + jnp.tanh(c * (x + 0.044715 * x * x * x)))


def mlp_kernel(x_ref, wfc_ref, bfc_ref, wproj_ref, bproj_ref, o_ref, acc_ref):
    # Grid: (M tiles [parallel], H chunks [arbitrary / reduction]).
    j = pl.program_id(1)

    @pl.when(j == 0)
    def _init():
        acc_ref[...] = jnp.zeros_like(acc_ref)

    # First matmul: (tm, C) @ (C, th) in bf16 on the MXU, accumulate in f32.
    x = x_ref[...].astype(wfc_ref.dtype)
    h = jnp.dot(x, wfc_ref[...], preferred_element_type=jnp.float32)  # (tm, th)
    h = h + bfc_ref[...]                                              # f32 bias add

    # Activation in f32 (portable across v5e/v6e/v7x; tanh goes to the EUP).
    g = _gelu_tanh(h)

    # Second matmul chunk: (tm, th) @ (th, C), accumulated into the f32 scratch.
    acc_ref[...] += jnp.dot(g.astype(wproj_ref.dtype), wproj_ref[...],
                            preferred_element_type=jnp.float32)       # (tm, C)

    @pl.when(j == pl.num_programs(1) - 1)
    def _finalize():
        o_ref[...] = (acc_ref[...] + bproj_ref[...]).astype(o_ref.dtype)


def _largest_divisor(n, limit, align):
    """Largest divisor of n that is <= limit, preferring multiples of `align`."""
    best_any = None
    for cand in range(min(limit, n), 0, -1):
        if n % cand == 0:
            if cand % align == 0:
                return cand
            if best_any is None:
                best_any = cand
    return best_any if best_any is not None else n


def _vmem_capacity_bytes():
    try:
        info = pltpu.get_tpu_info()
        cap = getattr(info, "vmem_capacity_bytes", None)
        if cap:
            return int(cap)
    except Exception:
        pass
    return 64 * 1024 * 1024  # conservative (v7x per-TC)


def _vmem_estimate(tm, th, C):
    """Rough VMEM footprint (bytes) for one grid step, incl. double-buffering."""
    x_buf = 2 * tm * C * 4          # x tile, f32, double-buffered
    out_buf = 2 * tm * C * 4        # output tile, f32, double-buffered
    acc = tm * C * 4                # f32 accumulator scratch
    wfc = 2 * C * th * 2            # W_fc chunk, bf16, double-buffered
    wproj = 2 * th * C * 2          # W_proj chunk, bf16, double-buffered
    bias = 2 * (th + C) * 4 * 2     # biases, f32, double-buffered
    interm = 2 * tm * th * 4        # h + GELU temporaries, f32
    return x_buf + out_buf + acc + wfc + wproj + bias + interm


def _choose_tiles(M, C, H, budget):
    # M tile: feed the MXU (>= 256 rows when possible).
    tm = _largest_divisor(M, 256, 8)

    # H chunk: largest lane-aligned divisor of H that fits the VMEM budget.
    # th == H => both weight matrices are grid-invariant and DMA'd exactly once.
    th = None
    for cand in range(H, 0, -1):
        if H % cand != 0:
            continue
        if cand != H and cand % 128 != 0:
            continue
        if _vmem_estimate(tm, cand, C) <= budget:
            th = cand
            break
    if th is None:
        th = _largest_divisor(H, 512, 128)

    # If the weights must be tiled (re-fetched per M tile), grow the M tile to
    # amortize that weight re-DMA, as long as it still fits the budget.
    if th < H:
        while (tm * 2 <= min(M, 1024) and M % (tm * 2) == 0
               and _vmem_estimate(tm * 2, th, C) <= budget):
            tm *= 2
    return tm, th


def mlp_pallas(x, w_fc, b_fc, w_proj, b_proj, *, tm=None, th=None):
    """x: (B, T, C); w_fc: (C, 4C); b_fc: (4C,); w_proj: (4C, C); b_proj: (C,)."""
    B, T, C = x.shape
    H = w_fc.shape[1]
    M = B * T

    vmem_cap = _vmem_capacity_bytes()
    budget = vmem_cap // 2                                   # our accounted buffers
    vmem_limit = min((vmem_cap * 3) // 4, 100 * 1024 * 1024) # leave HW headroom

    auto_tm, auto_th = _choose_tiles(M, C, H, budget)
    if tm is None:
        tm = auto_tm
    if th is None:
        th = auto_th
    assert M % tm == 0 and H % th == 0

    x2 = x.reshape(M, C)
    # bf16 weights: halves DMA bytes / resident VMEM and hits MXU bf16 peak.
    w_fc_bf = w_fc.astype(jnp.bfloat16)
    w_proj_bf = w_proj.astype(jnp.bfloat16)
    b_fc2 = b_fc.reshape(1, H).astype(jnp.float32)
    b_proj2 = b_proj.reshape(1, C).astype(jnp.float32)

    # Weight HBM traffic: once if resident (th == H), else once per M tile.
    w_bytes = w_fc_bf.size * 2 + w_proj_bf.size * 2
    w_traffic = w_bytes if th == H else w_bytes * (M // tm)
    cost = pl.CostEstimate(
        flops=4 * M * C * H,                       # two (M,C,H) matmuls
        transcendentals=M * H,                     # tanh per hidden element
        bytes_accessed=(x2.size * 4                # x in
                        + M * C * x.dtype.itemsize # out
                        + w_traffic
                        + b_fc2.size * 4 + b_proj2.size * 4),
    )

    out = pl.pallas_call(
        mlp_kernel,
        out_shape=jax.ShapeDtypeStruct((M, C), x.dtype),
        grid_spec=pltpu.PrefetchScalarGridSpec(
            num_scalar_prefetch=0,
            grid=(M // tm, H // th),
            in_specs=[
                pl.BlockSpec((tm, C), lambda i, j: (i, 0)),   # x tile
                pl.BlockSpec((C, th), lambda i, j: (0, j)),   # W_fc chunk
                pl.BlockSpec((1, th), lambda i, j: (0, j)),   # b_fc chunk
                pl.BlockSpec((th, C), lambda i, j: (j, 0)),   # W_proj chunk
                pl.BlockSpec((1, C), lambda i, j: (0, 0)),    # b_proj (invariant)
            ],
            out_specs=pl.BlockSpec((tm, C), lambda i, j: (i, 0)),
            scratch_shapes=[pltpu.VMEM((tm, C), jnp.float32)],  # f32 accumulator
        ),
        compiler_params=pltpu.CompilerParams(
            dimension_semantics=("parallel", "arbitrary"),
            vmem_limit_bytes=int(vmem_limit)),
        cost_estimate=cost,
    )(x2, w_fc_bf, b_fc2, w_proj_bf, b_proj2)

    return out.reshape(B, T, C)


def mlp_reference_f32(x, w_fc, b_fc, w_proj, b_proj):
    h = jnp.einsum("btc,ch->bth", x, w_fc) + b_fc
    g = _gelu_tanh(h)
    return jnp.einsum("bth,hc->btc", g, w_proj) + b_proj


def mlp_reference_bf16(x, w_fc, b_fc, w_proj, b_proj):
    # Matches the kernel's numerics: bf16 matmul inputs, f32 accumulation,
    # f32 bias adds and GELU.
    xb = x.astype(jnp.bfloat16)
    h = jnp.einsum("btc,ch->bth", xb, w_fc.astype(jnp.bfloat16),
                   preferred_element_type=jnp.float32) + b_fc
    g = _gelu_tanh(h)
    y = jnp.einsum("bth,hc->btc", g.astype(jnp.bfloat16),
                   w_proj.astype(jnp.bfloat16),
                   preferred_element_type=jnp.float32) + b_proj
    return y.astype(x.dtype)


if __name__ == "__main__":
    # Small GPT config: n_embd = 32, batch = 2, seq = 8.
    # NOTE: C=32 / M=16 is far below the (8,128) tile granularity; this only
    # validates correctness, not production-layout performance (use C>=768,
    # M>=2048 for perf work).
    B, T, C = 2, 8, 32
    H = 4 * C

    key = jax.random.PRNGKey(0)
    kx, k1, k2, k3, k4 = jax.random.split(key, 5)

    x = jax.random.normal(kx, (B, T, C), dtype=jnp.float32)
    # Deterministic parameter init (scaled like nn.Linear's uniform fan-in init).
    w_fc = jax.random.normal(k1, (C, H), dtype=jnp.float32) / math.sqrt(C)
    b_fc = jax.random.normal(k2, (H,), dtype=jnp.float32) * 0.01
    w_proj = jax.random.normal(k3, (H, C), dtype=jnp.float32) / math.sqrt(H)
    b_proj = jax.random.normal(k4, (C,), dtype=jnp.float32) * 0.01

    y = mlp_pallas(x, w_fc, b_fc, w_proj, b_proj)
    jax.block_until_ready(y)

    # Numerics-matched check (bf16 matmuls, f32 accumulation).
    y_bf16_ref = mlp_reference_bf16(x, w_fc, b_fc, w_proj, b_proj)
    assert jnp.allclose(y, y_bf16_ref, atol=1e-2, rtol=1e-2), \
        "mismatch vs bf16-matched reference"

    # Loose sanity check against the full-f32 reference (bounds bf16 quant error).
    y_f32_ref = mlp_reference_f32(x, w_fc, b_fc, w_proj, b_proj)
    assert jnp.allclose(y, y_f32_ref, atol=5e-2, rtol=5e-2), \
        "mismatch vs f32 reference"

    print("KERNEL_OK")
</pallas_src>

<mosaic_0001>
module attributes {stable_mosaic.version = 11 : i64} {
  func.func @mlp_kernel(%arg0: i32, %arg1: i32, %arg2: memref<16x32xf32, #tpu.memory_space<vmem>>, %arg3: memref<32x128xbf16, #tpu.memory_space<vmem>>, %arg4: memref<1x128xf32, #tpu.memory_space<vmem>>, %arg5: memref<128x32xbf16, #tpu.memory_space<vmem>>, %arg6: memref<1x32xf32, #tpu.memory_space<vmem>>, %arg7: memref<16x32xf32, #tpu.memory_space<vmem>>, %arg8: memref<16x32xf32, #tpu.memory_space<vmem>>) attributes {dimension_semantics = [#tpu.dimension_semantics<parallel>, #tpu.dimension_semantics<arbitrary>], iteration_bounds = array<i64: 1, 1>, scalar_prefetch = 0 : i64, scratch_operands = 1 : i64, tpu.core_type = #tpu.core_type<tc>, window_params = [{transform_indices = @transform_0, window_bounds = array<i64: 16, 32>}, {transform_indices = @transform_1, window_bounds = array<i64: 32, 128>}, {transform_indices = @transform_2, window_bounds = array<i64: 1, 128>}, {transform_indices = @transform_3, window_bounds = array<i64: 128, 32>}, {pipeline_mode = #tpu.pipeline_mode<synchronous>, transform_indices = @transform_4, window_bounds = array<i64: 1, 32>}, {transform_indices = @transform_5, window_bounds = array<i64: 16, 32>}]} {
    %c0_i32 = arith.constant 0 : i32
    %0 = arith.cmpi eq, %arg1, %c0_i32 : i32
    %1 = arith.extui %0 : i1 to i32
    %c0_i32_0 = arith.constant 0 : i32
    %2 = arith.cmpi ne, %1, %c0_i32_0 : i32
    scf.if %2 {
      %cst_19 = arith.constant 0.000000e+00 : f32
      %32 = vector.broadcast %cst_19 : f32 to vector<16x32xf32>
      %c0_20 = arith.constant 0 : index
      %c0_21 = arith.constant 0 : index
      %33 = vector.load %arg8[%c0_20, %c0_21] : memref<16x32xf32, #tpu.memory_space<vmem>>, vector<16x32xf32>
      tpu.vector_store %arg8[%c0_20, %c0_21], %32 {strides = array<i32>} : memref<16x32xf32, #tpu.memory_space<vmem>>, vector<16x32xf32>,
    } else {
    }
    %c0 = arith.constant 0 : index
    %c0_1 = arith.constant 0 : index
    %3 = vector.load %arg2[%c0, %c0_1] : memref<16x32xf32, #tpu.memory_space<vmem>>, vector<16x32xf32>
    %4 = arith.truncf %3 : vector<16x32xf32> to vector<16x32xbf16>
    %c0_2 = arith.constant 0 : index
    %c0_3 = arith.constant 0 : index
    %5 = vector.load %arg3[%c0_2, %c0_3] : memref<32x128xbf16, #tpu.memory_space<vmem>>, vector<32x128xbf16>
    %cst = arith.constant dense<0.000000e+00> : vector<16x128xf32>
    %6 = tpu.matmul %4, %5, %cst {dimension_numbers = #tpu.dot_dimension_numbers<[1], [0], [0], [1], [0, 0, 1, 1], [], []>} : vector<16x32xbf16>, vector<32x128xbf16>, vector<16x128xf32> -> vector<16x128xf32>
    %c0_4 = arith.constant 0 : index
    %c0_5 = arith.constant 0 : index
    %7 = vector.load %arg4[%c0_4, %c0_5] : memref<1x128xf32, #tpu.memory_space<vmem>>, vector<1x128xf32>
    %8 = vector.broadcast %7 : vector<1x128xf32> to vector<16x128xf32>
    %9 = arith.addf %6, %8 : vector<16x128xf32>
    %cst_6 = arith.constant 5.000000e-01 : f32
    %10 = vector.broadcast %cst_6 : f32 to vector<16x128xf32>
    %11 = arith.mulf %10, %9 : vector<16x128xf32>
    %cst_7 = arith.constant 4.471500e-02 : f32
    %12 = vector.broadcast %cst_7 : f32 to vector<16x128xf32>
    %13 = arith.mulf %12, %9 : vector<16x128xf32>
    %14 = arith.mulf %13, %9 : vector<16x128xf32>
    %15 = arith.mulf %14, %9 : vector<16x128xf32>
    %16 = arith.addf %9, %15 : vector<16x128xf32>
    %cst_8 = arith.constant 0.797884583 : f32
    %17 = vector.broadcast %cst_8 : f32 to vector<16x128xf32>
    %18 = arith.mulf %17, %16 : vector<16x128xf32>
    %19 = math.tanh %18 : vector<16x128xf32>
    %cst_9 = arith.constant 1.000000e+00 : f32
    %20 = vector.broadcast %cst_9 : f32 to vector<16x128xf32>
    %21 = arith.addf %20, %19 : vector<16x128xf32>
    %22 = arith.mulf %11, %21 : vector<16x128xf32>
    %c0_10 = arith.constant 0 : index
    %c0_11 = arith.constant 0 : index
    %23 = vector.load %arg8[%c0_10, %c0_11] : memref<16x32xf32, #tpu.memory_space<vmem>>, vector<16x32xf32>
    %24 = arith.truncf %22 : vector<16x128xf32> to vector<16x128xbf16>
    %c0_12 = arith.constant 0 : index
    %c0_13 = arith.constant 0 : index
    %25 = vector.load %arg5[%c0_12, %c0_13] : memref<128x32xbf16, #tpu.memory_space<vmem>>, vector<128x32xbf16>
    %cst_14 = arith.constant dense<0.000000e+00> : vector<16x32xf32>
    %26 = tpu.matmul %24, %25, %cst_14 {dimension_numbers = #tpu.dot_dimension_numbers<[1], [0], [0], [1], [0, 0, 1, 1], [], []>} : vector<16x128xbf16>, vector<128x32xbf16>, vector<16x32xf32> -> vector<16x32xf32>
    %27 = arith.addf %23, %26 : vector<16x32xf32>
    %c0_15 = arith.constant 0 : index
    %c0_16 = arith.constant 0 : index
    %28 = vector.load %arg8[%c0_15, %c0_16] : memref<16x32xf32, #tpu.memory_space<vmem>>, vector<16x32xf32>
    tpu.vector_store %arg8[%c0_15, %c0_16], %27 {strides = array<i32>} : memref<16x32xf32, #tpu.memory_space<vmem>>, vector<16x32xf32>,
    %c0_i32_17 = arith.constant 0 : i32
    %29 = arith.cmpi eq, %arg1, %c0_i32_17 : i32
    %30 = arith.extui %29 : i1 to i32
    %c0_i32_18 = arith.constant 0 : i32
    %31 = arith.cmpi ne, %30, %c0_i32_18 : i32
    scf.if %31 {
      %c0_19 = arith.constant 0 : index
      %c0_20 = arith.constant 0 : index
      %32 = vector.load %arg8[%c0_19, %c0_20] : memref<16x32xf32, #tpu.memory_space<vmem>>, vector<16x32xf32>
      %c0_21 = arith.constant 0 : index
      %c0_22 = arith.constant 0 : index
      %33 = vector.load %arg6[%c0_21, %c0_22] : memref<1x32xf32, #tpu.memory_space<vmem>>, vector<1x32xf32>
      %34 = vector.broadcast %33 : vector<1x32xf32> to vector<16x32xf32>
      %35 = arith.addf %32, %34 : vector<16x32xf32>
      %c0_23 = arith.constant 0 : index
      %c0_24 = arith.constant 0 : index
      %36 = vector.load %arg7[%c0_23, %c0_24] : memref<16x32xf32, #tpu.memory_space<vmem>>, vector<16x32xf32>
      tpu.vector_store %arg7[%c0_23, %c0_24], %35 {strides = array<i32>} : memref<16x32xf32, #tpu.memory_space<vmem>>, vector<16x32xf32>,
    } else {
    }
    return
  }
  func.func @transform_0(%arg0: i32, %arg1: i32) -> (i32, i32) {
    %c0_i32 = arith.constant 0 : i32
    %c0_i32_0 = arith.constant 0 : i32
    return %arg0, %c0_i32 : i32, i32
  }
  func.func @transform_1(%arg0: i32, %arg1: i32) -> (i32, i32) {
    %c0_i32 = arith.constant 0 : i32
    %c0_i32_0 = arith.constant 0 : i32
    return %c0_i32, %arg1 : i32, i32
  }
  func.func @transform_2(%arg0: i32, %arg1: i32) -> (i32, i32) {
    %c0_i32 = arith.constant 0 : i32
    %c0_i32_0 = arith.constant 0 : i32
    return %c0_i32, %arg1 : i32, i32
  }
  func.func @transform_3(%arg0: i32, %arg1: i32) -> (i32, i32) {
    %c0_i32 = arith.constant 0 : i32
    %c0_i32_0 = arith.constant 0 : i32
    return %arg1, %c0_i32 : i32, i32
  }
  func.func @transform_4(%arg0: i32, %arg1: i32) -> (i32, i32) {
    %c0_i32 = arith.constant 0 : i32
    %c0_i32_0 = arith.constant 0 : i32
    %c0_i32_1 = arith.constant 0 : i32
    return %c0_i32, %c0_i32_0 : i32, i32
  }
  func.func @transform_5(%arg0: i32, %arg1: i32) -> (i32, i32) {
    %c0_i32 = arith.constant 0 : i32
    %c0_i32_0 = arith.constant 0 : i32
    return %arg0, %c0_i32 : i32, i32
  }
}

</mosaic_0001>

<llo_original>
// kernel: tpu_custom_call.1
$region0: #{tpu_custom_call.1}
  #allocation0 [shape = 'u32[]', space=smem, size = 0x4, offset = 0x4, fixed_abs, tag = 'smem constant byte address 0x4 - core index']
  #allocation1 [shape = 'u32[144,128]{1,0:T(1,128)}', space=vmem, size = 0x12000, scoped, tag = 'internal scratch']
  #allocation2 [shape = 'f32[16,32]{1,0:T(8,128)}', space=vmem, size = 0x2000, scoped, tag = 'scratch operand']
  %s0 = inlined_call_operand.vmem [shape: f32[16,32], index: 0, kind: input, shape index: {}]
  %s1 = inlined_call_operand.vmem [shape: bf16[32,128], index: 1, kind: input, shape index: {}]
  %s2 = inlined_call_operand.vmem [shape: f32[1,128], index: 2, kind: input, shape index: {}]
  %s3 = inlined_call_operand.vmem [shape: bf16[128,32], index: 3, kind: input, shape index: {}]
  %s4 = inlined_call_operand.vmem [shape: f32[1,32], index: 4, kind: input, shape index: {}]
  %s5 = inlined_call_operand.hbm [shape: f32[16,32], index: 5, kind: output, shape index: {}]
  %s6 = sld [smem:[#allocation0]]
  $region38: #{tpu_custom_call.1} parent=0
    _
  %s8 = ssub.s32 1, %s6
  %s9 = scalar_select 0, %s8, %s6
  $region1: #{tpu_custom_call.1} parent=0
    #allocation3 [shape = 'u8[8192]{0}', space=vmem, size = 0x2000, scoped, tag = 'output window, operand 0, single buffered']
    #allocation4 [shape = 's32[1]{0}', space=sflag, size = 0x4, scoped, tag = 'scoped memory for tpu_custom_call.1']
    %10 = vsyncpa [#allocation4], 0
    // Predicated region
    $region2: #{tpu_custom_call.1} parent=1 // pred_check
      _
    $region3: #{tpu_custom_call.1} parent=1 // pred_check_branch
      %12 = sbr.rel (0) target = $region5
    $region4: #{tpu_custom_call.1} parent=1 // pred_region
      _
    $region5: #{tpu_custom_call.1} parent=1 // pred_fallthru
      _
    // Predicated region
    $region6: #{tpu_custom_call.1} parent=1 // pred_check
      _
    $region7: #{tpu_custom_call.1} parent=1 // pred_check_branch
      %14 = sbr.rel (0) target = $region9
    $region8: #{tpu_custom_call.1} parent=1 // pred_region
      _
    $region9: #{tpu_custom_call.1} parent=1 // pred_fallthru
      _
    // Predicated region
    $region10: #{tpu_custom_call.1} parent=1 // pred_check
      _
    $region11: #{tpu_custom_call.1} parent=1 // pred_check_branch
      %16 = sbr.rel (0) target = $region13
    $region12: #{tpu_custom_call.1} parent=1 // pred_region
      _
    $region13: #{tpu_custom_call.1} parent=1 // pred_fallthru
      _
    // Predicated region
    $region14: #{tpu_custom_call.1} parent=1 // pred_check
      _
    $region15: #{tpu_custom_call.1} parent=1 // pred_check_branch
      %18 = sbr.rel (0) target = $region17
    $region16: #{tpu_custom_call.1} parent=1 // pred_region
      _
    $region17: #{tpu_custom_call.1} parent=1 // pred_fallthru
      _
    // Predicated region
    $region18: #{tpu_custom_call.1} parent=1 // pred_check
      _
    $region19: #{tpu_custom_call.1} parent=1 // pred_check_branch
      %20 = sbr.rel (0) target = $region21
    $region20: #{tpu_custom_call.1} parent=1 // pred_region
      _
    $region21: #{tpu_custom_call.1} parent=1 // pred_fallthru
      _
    %p22 = scmp.eq.s32.totalorder 0, 0
    // Predicated region
    $region22: #{tpu_custom_call.1} parent=1 // pred_check
      %p23 = pneg %p22
    $region23: #{tpu_custom_call.1} parent=1 // pred_check_branch
      %25 = sbr.rel (%p23) target = $region25
    $region24: #{tpu_custom_call.1} parent=1 // pred_region
      %vm26 = vcmask 261120
      %27 = vst.msk [vmem:[#allocation2] sm:$0xff] %vm26, 0.0
      %28 = vst.msk [vmem:[#allocation2 + $0x8] sm:$0xff] %vm26, 0.0
    $region25: #{tpu_custom_call.1} parent=1 // pred_fallthru
      _
    %v29 = vld [vmem:[%s0] sm:$0xff]
    %v30 = vld [vmem:[%s0 + $0x8] sm:$0xff]
    %v31 = vpack.c.bf16 %v30, %v29
    %v32 = vld [vmem:[%s1] sm:$0xf]
    %v33 = vld [vmem:[%s1 + $0x4] sm:$0xf]
    %v34 = vld [vmem:[%s1 + $0x8] sm:$0xf]
    %v35 = vld [vmem:[%s1 + $0xc] sm:$0xf]
    %v36 = vld [vmem:[%s2] sm:$0x1]
    %v38 = vlaneseq
    %v39 = vshrl.u32 %v38, 7
    %v40 = vsub.s32 0, %v39
    %v41 = vrot.slane %v36, %v40
    %v47 = vunpack.c.l.b16 %v32
    %v48 = vunpack.c.l.b16 %v33
    %v49 = vunpack.c.l.b16 %v34
    %v50 = vunpack.c.l.b16 %v35
    %v51 = vpack.c.b16 %v48, %v47
    %v52 = vpack.c.b16 %v50, %v49
    %vm55 = vcmask 261120
    %v57 = vsel %vm55, %v31, 0
    %59 = vmatprep.subr.bf16.mxu0 0
    %60 = vmatpush1.bf16.msra.mxu0 %v51
    %61 = vmatprep.subr.bf16.mxu0 0
    %62 = vmatpush1.bf16.msra.mxu0 %v52
    %63 = vmatprep.subr.bf16.mxu0 0
    %64 = vmatpush1.bf16.msra.mxu0 0
    %65 = vmatprep.subr.bf16.mxu0 0
    %66 = vmatpush1.bf16.msra.mxu0 0
    %67 = vmatprep.subr.bf16.mxu0 0
    %68 = vmatpush1.bf16.msra.mxu0 0
    %69 = vmatprep.subr.bf16.mxu0 0
    %70 = vmatpush1.bf16.msra.mxu0 0
    %71 = vmatprep.subr.bf16.mxu0 0
    %72 = vmatpush1.bf16.msra.mxu0 0
    %73 = vmatprep.subr.bf16.mxu0 0
    %74 = vmatpush1.bf16.msra.mxu0 0
    %75 = vmatprep.subr.bf16.mxu0 0
    %76 = vmatpush1.bf16.msra.mxu0 0
    %77 = vmatprep.subr.bf16.mxu0 0
    %78 = vmatpush1.bf16.msra.mxu0 0
    %79 = vmatprep.subr.bf16.mxu0 0
    %80 = vmatpush1.bf16.msra.mxu0 0
    %81 = vmatprep.subr.bf16.mxu0 0
    %82 = vmatpush1.bf16.msra.mxu0 0
    %83 = vmatprep.subr.bf16.mxu0 0
    %84 = vmatpush1.bf16.msra.mxu0 0
    %85 = vmatprep.subr.bf16.mxu0 0
    %86 = vmatpush1.bf16.msra.mxu0 0
    %87 = vmatprep.subr.bf16.mxu0 0
    %88 = vmatpush1.bf16.msra.mxu0 0
    %89 = vmatprep.subr.bf16.mxu0 0
    %90 = vmatpush1.bf16.msra.mxu0 0
    %91 = vmatprep.mubr.bf16.mxu0 0
    %92 = vmatmul.mubr.bf16.gmra.mrb[0].mxu0 %v57
    %v93 = vpop.f32.mrb[0].mxu0
    %v94 = vadd.f32 %v41, %v93
    %v95 = vpop.f32.mrb[0].mxu0
    %v96 = vpop.f32.mrb[0].mxu0
    %v97 = vadd.f32 %v41, %v96
    %v98 = vpop.f32.mrb[0].mxu0
    %99 = vdwg.mxu0
    %v100 = vmul.f32 %v94, 0.5
    %v101 = vmul.f32 %v97, 0.5
    %v102 = vmul.f32 %v94, 0.044715
    %v103 = vmul.f32 %v97, 0.044715
    %v104 = vmul.f32 %v102, %v94
    %v105 = vmul.f32 %v103, %v97
    %v106 = vmul.f32 %v104, %v94
    %v107 = vmul.f32 %v105, %v97
    %v108 = vadd.f32 %v94, %v106
    %v109 = vadd.f32 %v97, %v107
    %v110 = vmul.f32 %v108, 0.7978846
    %v111 = vmul.f32 %v109, 0.7978846
    %v112 = vtanh.pop %v110
    %v113 = vtanh.pop %v111
    %v114 = vadd.f32 %v112, 1.0
    %v115 = vadd.f32 %v113, 1.0
    %v116 = vmul.f32 %v100, %v114
    %v117 = vmul.f32 %v101, %v115
    %v118 = vld [vmem:[#allocation2] sm:$0xff]
    %v119 = vld [vmem:[#allocation2 + $0x8] sm:$0xff]
    %v120 = vpack.c.bf16 %v117, %v116
    %v121 = vld [vmem:[%s3] sm:$0xf]
    %v122 = vld [vmem:[%s3 + $0x4] sm:$0xf]
    %v123 = vld [vmem:[%s3 + $0x8] sm:$0xf]
    %v124 = vld [vmem:[%s3 + $0xc] sm:$0xf]
    %v125 = vld [vmem:[%s3 + $0x10] sm:$0xf]
    %v126 = vld [vmem:[%s3 + $0x14] sm:$0xf]
    %v127 = vld [vmem:[%s3 + $0x18] sm:$0xf]
    %v128 = vld [vmem:[%s3 + $0x1c] sm:$0xf]
    %v129 = vld [vmem:[%s3 + $0x20] sm:$0xf]
    %v130 = vld [vmem:[%s3 + $0x24] sm:$0xf]
    %v131 = vld [vmem:[%s3 + $0x28] sm:$0xf]
    %v132 = vld [vmem:[%s3 + $0x2c] sm:$0xf]
    %v133 = vld [vmem:[%s3 + $0x30] sm:$0xf]
    %v134 = vld [vmem:[%s3 + $0x34] sm:$0xf]
    %v135 = vld [vmem:[%s3 + $0x38] sm:$0xf]
    %v136 = vld [vmem:[%s3 + $0x3c] sm:$0xf]
    %v153 = vunpack.c.l.b16 %v121
    %v154 = vunpack.c.l.b16 %v122
    %v155 = vunpack.c.l.b16 %v123
    %v156 = vunpack.c.l.b16 %v124
    %v157 = vunpack.c.l.b16 %v125
    %v158 = vunpack.c.l.b16 %v126
    %v159 = vunpack.c.l.b16 %v127
    %v160 = vunpack.c.l.b16 %v128
    %v161 = vunpack.c.l.b16 %v129
    %v162 = vunpack.c.l.b16 %v130
    %v163 = vunpack.c.l.b16 %v131
    %v164 = vunpack.c.l.b16 %v132
    %v165 = vunpack.c.l.b16 %v133
    %v166 = vunpack.c.l.b16 %v134
    %v167 = vunpack.c.l.b16 %v135
    %v168 = vunpack.c.l.b16 %v136
    %v169 = vpack.c.b16 %v154, %v153
    %v170 = vpack.c.b16 %v156, %v155
    %v171 = vpack.c.b16 %v158, %v157
    %v172 = vpack.c.b16 %v160, %v159
    %v173 = vpack.c.b16 %v162, %v161
    %v174 = vpack.c.b16 %v164, %v163
    %v175 = vpack.c.b16 %v166, %v165
    %v176 = vpack.c.b16 %v168, %v167
    %185 = vmatprep.subr.bf16.mxu0 0
    %186 = vmatpush1.bf16.msra.mxu0 %v169
    %187 = vmatprep.subr.bf16.mxu0 0
    %188 = vmatpush1.bf16.msra.mxu0 %v170
    %189 = vmatprep.subr.bf16.mxu0 0
    %190 = vmatpush1.bf16.msra.mxu0 %v171
    %191 = vmatprep.subr.bf16.mxu0 0
    %192 = vmatpush1.bf16.msra.mxu0 %v172
    %193 = vmatprep.subr.bf16.mxu0 0
    %194 = vmatpush1.bf16.msra.mxu0 %v173
    %195 = vmatprep.subr.bf16.mxu0 0
    %196 = vmatpush1.bf16.msra.mxu0 %v174
    %197 = vmatprep.subr.bf16.mxu0 0
    %198 = vmatpush1.bf16.msra.mxu0 %v175
    %199 = vmatprep.subr.bf16.mxu0 0
    %200 = vmatpush1.bf16.msra.mxu0 %v176
    %201 = vmatprep.subr.bf16.mxu0 0
    %202 = vmatpush1.bf16.msra.mxu0 0
    %203 = vmatprep.subr.bf16.mxu0 0
    %204 = vmatpush1.bf16.msra.mxu0 0
    %205 = vmatprep.subr.bf16.mxu0 0
    %206 = vmatpush1.bf16.msra.mxu0 0
    %207 = vmatprep.subr.bf16.mxu0 0
    %208 = vmatpush1.bf16.msra.mxu0 0
    %209 = vmatprep.subr.bf16.mxu0 0
    %210 = vmatpush1.bf16.msra.mxu0 0
    %211 = vmatprep.subr.bf16.mxu0 0
    %212 = vmatpush1.bf16.msra.mxu0 0
    %213 = vmatprep.subr.bf16.mxu0 0
    %214 = vmatpush1.bf16.msra.mxu0 0
    %215 = vmatprep.subr.bf16.mxu0 0
    %216 = vmatpush1.bf16.msra.mxu0 0
    %217 = vmatprep.mubr.bf16.mxu0 0
    %218 = vmatmul.mubr.bf16.gmra.mrb[0].mxu0 %v120
    %v219 = vpop.f32.mrb[0].mxu0
    %v220 = vadd.f32 0.0, %v219
    %v221 = vpop.f32.mrb[0].mxu0
    %v222 = vpop.f32.mrb[0].mxu0
    %v223 = vadd.f32 0.0, %v222
    %v224 = vpop.f32.mrb[0].mxu0
    %225 = vdwg.mxu0
    %v226 = vadd.f32 %v118, %v220
    %v227 = vadd.f32 %v119, %v223
    %228 = vst.msk [vmem:[#allocation2] sm:$0xff] %vm55, %v226
    %229 = vst.msk [vmem:[#allocation2 + $0x8] sm:$0xff] %vm55, %v227
    // Predicated region
    $region26: #{tpu_custom_call.1} parent=1 // pred_check
      %p230 = pneg %p22
    $region27: #{tpu_custom_call.1} parent=1 // pred_check_branch
      %232 = sbr.rel (%p230) target = $region29
    $region28: #{tpu_custom_call.1} parent=1 // pred_region
      %v233 = vld [vmem:[#allocation2] sm:$0xff]
      %v234 = vld [vmem:[#allocation2 + $0x8] sm:$0xff]
      %v235 = vld [vmem:[%s4] sm:$0x1]
      %v237 = vlaneseq
      %v238 = vshrl.u32 %v237, 7
      %v239 = vsub.s32 0, %v238
      %v240 = vrot.slane %v235, %v239
      %v242 = vadd.f32 %v233, %v240
      %v243 = vadd.f32 %v234, %v240
      %244 = vst.msk [vmem:[#allocation3] sm:$0xff] %vm55, %v242
      %245 = vst.msk [vmem:[#allocation3 + $0x8] sm:$0xff] %vm55, %v243
    $region29: #{tpu_custom_call.1} parent=1 // pred_fallthru
      _
    // Predicated region
    $region30: #{tpu_custom_call.1} parent=1 // pred_check
      _
    $region31: #{tpu_custom_call.1} parent=1 // pred_check_branch
      %247 = sbr.rel (0) target = $region33
    $region32: #{tpu_custom_call.1} parent=1 // pred_region
      %s249 = ssub.s32 256, 256
      %250 = vsyncadd [#allocation4], %s249
      %s251 = sshll.u32 [#allocation3], 4
      %s252 = int_to_ptr.vmem [resolvable:$true] %s251
      %257 = dma.vmem_to_hbm [thread:$0]  %s252, 256, %s5, [#allocation4], 128, 128, 8
    $region33: #{tpu_custom_call.1} parent=1 // pred_fallthru
      _
    // Predicated region
    $region34: #{tpu_custom_call.1} parent=1 // pred_check
      _
    $region35: #{tpu_custom_call.1} parent=1 // pred_check_branch
      %259 = sbr.rel (0) target = $region37
    $region36: #{tpu_custom_call.1} parent=1 // pred_region
      %260 = dma.done [#allocation4], 256
    $region37: #{tpu_custom_call.1} parent=1 // pred_fallthru
      _
    %261 = vsyncpa [#allocation4], 1

</llo_original>
